<compile_context>
chip_gen: v7x
topology: tpu7x:2x2x1
jax: 0.10.0
libtpu: 0.0.40
codegen_flags: <defaults>
</compile_context>

<pallas_src>
import functools
import math

import jax
import jax.numpy as jnp
from jax.experimental import pallas as pl
from jax.experimental.pallas import tpu as pltpu


def _round_up(a, b):
    return (a + b - 1) // b * b


# ----------------------------- Pallas kernel --------------------------------


def dqn_kernel(x_ref,
               w1_ref, b1_ref,
               wh_ref, bh_ref,
               w2_ref, b2_ref,
               out_ref, *, output_dim):
    # feature: Linear(input_dim, 128) + ReLU   (bf16 x bf16 -> f32 acc)
    x = x_ref[...].astype(jnp.bfloat16)
    h = jnp.dot(x, w1_ref[...], preferred_element_type=jnp.float32) + b1_ref[...]
    h = jnp.maximum(h, 0.0)

    # fused hidden level: [adv_hidden || val_hidden]  -> [TB, 256]
    h1 = jnp.dot(h.astype(jnp.bfloat16), wh_ref[...],
                 preferred_element_type=jnp.float32) + bh_ref[...]
    h1 = jnp.maximum(h1, 0.0)

    # fused output level: block weight [256, N_pad]; lanes 0..out-1 = adv,
    # lane `out` = val, remaining lanes are exactly zero.
    z = jnp.dot(h1.astype(jnp.bfloat16), w2_ref[...],
                preferred_element_type=jnp.float32) + b2_ref[...]

    # dueling combine: val + adv - adv.mean(dim=1, keepdim=True)
    # padded lanes of z are exactly zero, so adv_sum = full_sum - val.
    lane = jax.lax.broadcasted_iota(jnp.int32, z.shape, 1)
    val = jnp.sum(jnp.where(lane == output_dim, z, 0.0), axis=1, keepdims=True)
    full = jnp.sum(z, axis=1, keepdims=True)
    adv_mean = (full - val) * (1.0 / output_dim)

    # lane-dense 128-wide bf16 store; extra lanes are sliced off outside.
    out_ref[...] = (z + val - adv_mean).astype(out_ref.dtype)


def dqn_forward(x, packed, output_dim):
    """Run the fused DQN forward pass with one batch-tiled Pallas call."""
    B, input_dim = x.shape
    H = 128
    N_pad = packed["w2"].shape[1]     # padded output lanes (mult. of 128)

    # Batch tile: multiple of 16 (bf16 native sublane tile), <= 1024 rows.
    # For medium/large B aim for >= 2 grid steps so both TensorCores get work
    # on v7x; tiny batches use a single grid step.
    if B >= 2048:
        TB = 1024
    elif B >= 64:
        TB = min(1024, _round_up(pl.cdiv(B, 2), 16))
    else:
        TB = _round_up(max(B, 16), 16)
    B_pad = _round_up(B, TB)

    if B_pad != B:
        x_in = jnp.zeros((B_pad, input_dim), x.dtype).at[:B, :].set(x)
    else:
        x_in = x

    kernel = functools.partial(dqn_kernel, output_dim=output_dim)

    weight_bytes = sum(int(v.size) * v.dtype.itemsize for v in packed.values())
    cost = pl.CostEstimate(
        flops=2 * B_pad * (input_dim * H + H * (2 * H) + (2 * H) * N_pad),
        transcendentals=0,
        bytes_accessed=int(x_in.size) * x_in.dtype.itemsize
                       + B_pad * N_pad * 2
                       + weight_bytes,
    )

    out = pl.pallas_call(
        kernel,
        out_shape=jax.ShapeDtypeStruct((B_pad, N_pad), jnp.bfloat16),
        grid=(B_pad // TB,),
        in_specs=[
            pl.BlockSpec((TB, input_dim), lambda i: (i, 0)),  # x tile (f32)
            pl.BlockSpec((input_dim, H), lambda i: (0, 0)),   # w1 (resident)
            pl.BlockSpec((1, H), lambda i: (0, 0)),           # b1
            pl.BlockSpec((H, 2 * H), lambda i: (0, 0)),       # wa1||wv1
            pl.BlockSpec((1, 2 * H), lambda i: (0, 0)),       # ba1||bv1
            pl.BlockSpec((2 * H, N_pad), lambda i: (0, 0)),   # [wa2;wv2] block
            pl.BlockSpec((1, N_pad), lambda i: (0, 0)),       # ba2|bv2 packed
        ],
        out_specs=pl.BlockSpec((TB, N_pad), lambda i: (i, 0)),
        compiler_params=pltpu.CompilerParams(
            dimension_semantics=("parallel",)),
        cost_estimate=cost,
    )(x_in, packed["w1"], packed["b1"], packed["wh"], packed["bh"],
      packed["w2"], packed["b2"])

    return out[:B, :output_dim].astype(jnp.float32)


# ------------------------- deterministic param setup -------------------------


def _noisy_f(key, size):
    # f(x) = sign(x) * sqrt(|x|) on standard normal draws (NoisyLinear._f)
    x = jax.random.normal(key, (size,), dtype=jnp.float32)
    return jnp.sign(x) * jnp.sqrt(jnp.abs(x))


def make_noisy_linear(key, in_features, out_features, sigma_init=0.5):
    """Return effective (training-mode) weight [in, out] and bias [1, out]."""
    k_mu_w, k_mu_b, k_eps_in, k_eps_out = jax.random.split(key, 4)
    mu_range = 1.0 / math.sqrt(in_features)

    weight_mu = jax.random.uniform(
        k_mu_w, (out_features, in_features), jnp.float32, -mu_range, mu_range)
    weight_sigma = jnp.full((out_features, in_features),
                            sigma_init * mu_range, jnp.float32)
    bias_mu = jax.random.uniform(
        k_mu_b, (out_features,), jnp.float32, -mu_range, mu_range)
    bias_sigma = jnp.full((out_features,), sigma_init * mu_range, jnp.float32)

    eps_in = _noisy_f(k_eps_in, in_features)
    eps_out = _noisy_f(k_eps_out, out_features)
    weight_eps = jnp.outer(eps_out, eps_in)        # epsilon_out.ger(epsilon_in)
    bias_eps = eps_out

    weight = weight_mu + weight_sigma * weight_eps  # training-mode effective W
    bias = bias_mu + bias_sigma * bias_eps
    return weight.T, bias.reshape(1, out_features)  # [in, out], [1, out]


def make_linear(key, in_features, out_features):
    k_w, k_b = jax.random.split(key)
    bound = 1.0 / math.sqrt(in_features)
    weight = jax.random.uniform(
        k_w, (out_features, in_features), jnp.float32, -bound, bound)
    bias = jax.random.uniform(
        k_b, (out_features,), jnp.float32, -bound, bound)
    return weight.T, bias.reshape(1, out_features)


def make_dqn_params(key, input_dim, output_dim):
    k1, k2, k3, k4, k5 = jax.random.split(key, 5)
    w1, b1 = make_linear(k1, input_dim, 128)
    wa1, ba1 = make_noisy_linear(k2, 128, 128)
    wa2, ba2 = make_noisy_linear(k3, 128, output_dim)
    wv1, bv1 = make_noisy_linear(k4, 128, 128)
    wv2, bv2 = make_noisy_linear(k5, 128, 1)
    return dict(w1=w1, b1=b1, wa1=wa1, ba1=ba1, wa2=wa2, ba2=ba2,
                wv1=wv1, bv1=bv1, wv2=wv2, bv2=bv2)


def pack_params(p, input_dim, output_dim):
    """Fuse + pad parameters for the kernel (bf16 weights, f32 biases)."""
    H = 128
    N_pad = _round_up(output_dim + 1, 128)

    # feature layer: real contraction dim (no K-padding)
    w1 = p["w1"]                                     # [input_dim, 128]

    # fused hidden level: [wa1 || wv1] -> [128, 256]
    wh = jnp.concatenate([p["wa1"], p["wv1"]], axis=1)
    bh = jnp.concatenate([p["ba1"], p["bv1"]], axis=1)

    # fused output level: block weight [256, N_pad]
    #   rows 0:128   x cols 0:out        = wa2
    #   rows 128:256 x col  out          = wv2
    #   all other lanes exactly zero
    w2 = jnp.zeros((2 * H, N_pad), jnp.float32)
    w2 = w2.at[:H, :output_dim].set(p["wa2"])
    w2 = w2.at[H:, output_dim:output_dim + 1].set(p["wv2"])
    b2 = jnp.zeros((1, N_pad), jnp.float32)
    b2 = b2.at[:, :output_dim].set(p["ba2"])
    b2 = b2.at[:, output_dim:output_dim + 1].set(p["bv2"])

    return dict(
        w1=w1.astype(jnp.bfloat16), b1=p["b1"],
        wh=wh.astype(jnp.bfloat16), bh=bh,
        w2=w2.astype(jnp.bfloat16), b2=b2,
    )


# ------------------------------- reference -----------------------------------


def dqn_reference(x, p):
    """Pure-JAX reference mirroring the kernel's bf16-operand / f32-acc math."""
    def bdot(a, b):
        return jnp.dot(a.astype(jnp.bfloat16), b.astype(jnp.bfloat16),
                       preferred_element_type=jnp.float32)
    h = jnp.maximum(bdot(x, p["w1"]) + p["b1"], 0.0)
    a1 = jnp.maximum(bdot(h, p["wa1"]) + p["ba1"], 0.0)
    adv = bdot(a1, p["wa2"]) + p["ba2"]
    v1 = jnp.maximum(bdot(h, p["wv1"]) + p["bv1"], 0.0)
    val = bdot(v1, p["wv2"]) + p["bv2"]
    return val + adv - jnp.mean(adv, axis=1, keepdims=True)


if __name__ == "__main__":
    key = jax.random.PRNGKey(0)
    k_params, k_x = jax.random.split(key)

    batch = 8
    input_dim = 32
    output_dim = 8

    params = make_dqn_params(k_params, input_dim, output_dim)
    packed = pack_params(params, input_dim, output_dim)
    x = jax.random.normal(k_x, (batch, input_dim), dtype=jnp.float32)

    out = dqn_forward(x, packed, output_dim)
    out = jax.block_until_ready(out)

    ref = dqn_reference(x, params)
    assert out.shape == (batch, output_dim)
    # bf16 output store -> ~0.4% relative quantization on top of bf16 weights
    assert jnp.allclose(out, ref, atol=2e-2, rtol=2e-2), "mismatch vs reference"

    print("KERNEL_OK")
</pallas_src>

<mosaic_0001>
module attributes {stable_mosaic.version = 11 : i64} {
  func.func @dqn_kernel(%arg0: i32, %arg1: memref<16x32xf32, #tpu.memory_space<vmem>>, %arg2: memref<32x128xbf16, #tpu.memory_space<vmem>>, %arg3: memref<1x128xf32, #tpu.memory_space<vmem>>, %arg4: memref<128x256xbf16, #tpu.memory_space<vmem>>, %arg5: memref<1x256xf32, #tpu.memory_space<vmem>>, %arg6: memref<256x128xbf16, #tpu.memory_space<vmem>>, %arg7: memref<1x128xf32, #tpu.memory_space<vmem>>, %arg8: memref<16x128xbf16, #tpu.memory_space<vmem>>) attributes {dimension_semantics = [#tpu.dimension_semantics<parallel>], iteration_bounds = array<i64: 1>, scalar_prefetch = 0 : i64, scratch_operands = 0 : i64, tpu.core_type = #tpu.core_type<tc>, window_params = [{transform_indices = @transform_0, window_bounds = array<i64: 16, 32>}, {pipeline_mode = #tpu.pipeline_mode<synchronous>, transform_indices = @transform_1, window_bounds = array<i64: 32, 128>}, {pipeline_mode = #tpu.pipeline_mode<synchronous>, transform_indices = @transform_2, window_bounds = array<i64: 1, 128>}, {pipeline_mode = #tpu.pipeline_mode<synchronous>, transform_indices = @transform_3, window_bounds = array<i64: 128, 256>}, {pipeline_mode = #tpu.pipeline_mode<synchronous>, transform_indices = @transform_4, window_bounds = array<i64: 1, 256>}, {pipeline_mode = #tpu.pipeline_mode<synchronous>, transform_indices = @transform_5, window_bounds = array<i64: 256, 128>}, {pipeline_mode = #tpu.pipeline_mode<synchronous>, transform_indices = @transform_6, window_bounds = array<i64: 1, 128>}, {transform_indices = @transform_7, window_bounds = array<i64: 16, 128>}]} {
    %c0 = arith.constant 0 : index
    %c0_0 = arith.constant 0 : index
    %0 = vector.load %arg1[%c0, %c0_0] : memref<16x32xf32, #tpu.memory_space<vmem>>, vector<16x32xf32>
    %1 = arith.truncf %0 : vector<16x32xf32> to vector<16x32xbf16>
    %c0_1 = arith.constant 0 : index
    %c0_2 = arith.constant 0 : index
    %2 = vector.load %arg2[%c0_1, %c0_2] : memref<32x128xbf16, #tpu.memory_space<vmem>>, vector<32x128xbf16>
    %cst = arith.constant dense<0.000000e+00> : vector<16x128xf32>
    %3 = tpu.matmul %1, %2, %cst {dimension_numbers = #tpu.dot_dimension_numbers<[1], [0], [0], [1], [0, 0, 1, 1], [], []>} : vector<16x32xbf16>, vector<32x128xbf16>, vector<16x128xf32> -> vector<16x128xf32>
    %c0_3 = arith.constant 0 : index
    %c0_4 = arith.constant 0 : index
    %4 = vector.load %arg3[%c0_3, %c0_4] : memref<1x128xf32, #tpu.memory_space<vmem>>, vector<1x128xf32>
    %5 = vector.broadcast %4 : vector<1x128xf32> to vector<16x128xf32>
    %6 = arith.addf %3, %5 : vector<16x128xf32>
    %cst_5 = arith.constant 0.000000e+00 : f32
    %7 = vector.broadcast %cst_5 : f32 to vector<16x128xf32>
    %8 = arith.maximumf %6, %7 : vector<16x128xf32>
    %9 = arith.truncf %8 : vector<16x128xf32> to vector<16x128xbf16>
    %c0_6 = arith.constant 0 : index
    %c0_7 = arith.constant 0 : index
    %10 = vector.load %arg4[%c0_6, %c0_7] : memref<128x256xbf16, #tpu.memory_space<vmem>>, vector<128x256xbf16>
    %cst_8 = arith.constant dense<0.000000e+00> : vector<16x256xf32>
    %11 = tpu.matmul %9, %10, %cst_8 {dimension_numbers = #tpu.dot_dimension_numbers<[1], [0], [0], [1], [0, 0, 1, 1], [], []>} : vector<16x128xbf16>, vector<128x256xbf16>, vector<16x256xf32> -> vector<16x256xf32>
    %c0_9 = arith.constant 0 : index
    %c0_10 = arith.constant 0 : index
    %12 = vector.load %arg5[%c0_9, %c0_10] : memref<1x256xf32, #tpu.memory_space<vmem>>, vector<1x256xf32>
    %13 = vector.broadcast %12 : vector<1x256xf32> to vector<16x256xf32>
    %14 = arith.addf %11, %13 : vector<16x256xf32>
    %cst_11 = arith.constant 0.000000e+00 : f32
    %15 = vector.broadcast %cst_11 : f32 to vector<16x256xf32>
    %16 = arith.maximumf %14, %15 : vector<16x256xf32>
    %17 = arith.truncf %16 : vector<16x256xf32> to vector<16x256xbf16>
    %c0_12 = arith.constant 0 : index
    %c0_13 = arith.constant 0 : index
    %18 = vector.load %arg6[%c0_12, %c0_13] : memref<256x128xbf16, #tpu.memory_space<vmem>>, vector<256x128xbf16>
    %cst_14 = arith.constant dense<0.000000e+00> : vector<16x128xf32>
    %19 = tpu.matmul %17, %18, %cst_14 {dimension_numbers = #tpu.dot_dimension_numbers<[1], [0], [0], [1], [0, 0, 1, 1], [], []>} : vector<16x256xbf16>, vector<256x128xbf16>, vector<16x128xf32> -> vector<16x128xf32>
    %c0_15 = arith.constant 0 : index
    %c0_16 = arith.constant 0 : index
    %20 = vector.load %arg7[%c0_15, %c0_16] : memref<1x128xf32, #tpu.memory_space<vmem>>, vector<1x128xf32>
    %21 = vector.broadcast %20 : vector<1x128xf32> to vector<16x128xf32>
    %22 = arith.addf %19, %21 : vector<16x128xf32>
    %23 = tpu.iota {dimensions = array<i32: 1>} : vector<16x128xi32>
    %c8_i32 = arith.constant 8 : i32
    %24 = vector.broadcast %c8_i32 : i32 to vector<16x128xi32>
    %25 = arith.cmpi eq, %23, %24 : vector<16x128xi32>
    %cst_17 = arith.constant 0.000000e+00 : f32
    %26 = vector.broadcast %cst_17 : f32 to vector<16x128xf32>
    %27 = arith.select %25, %22, %26 : vector<16x128xi1>, vector<16x128xf32>
    %cst_18 = arith.constant dense<0.000000e+00> : vector<16xf32>
    %28 = vector.multi_reduction <add>, %27, %cst_18 [1] : vector<16x128xf32> to vector<16xf32>
    %29 = vector.shape_cast %28 : vector<16xf32> to vector<16x1xf32>
    %cst_19 = arith.constant dense<0.000000e+00> : vector<16xf32>
    %30 = vector.multi_reduction <add>, %22, %cst_19 [1] : vector<16x128xf32> to vector<16xf32>
    %31 = vector.shape_cast %30 : vector<16xf32> to vector<16x1xf32>
    %32 = arith.subf %31, %29 : vector<16x1xf32>
    %cst_20 = arith.constant 1.250000e-01 : f32
    %33 = vector.broadcast %cst_20 : f32 to vector<16x1xf32>
    %34 = arith.mulf %32, %33 : vector<16x1xf32>
    %35 = vector.broadcast %29 : vector<16x1xf32> to vector<16x128xf32>
    %36 = arith.addf %22, %35 : vector<16x128xf32>
    %37 = vector.broadcast %34 : vector<16x1xf32> to vector<16x128xf32>
    %38 = arith.subf %36, %37 : vector<16x128xf32>
    %39 = arith.truncf %38 : vector<16x128xf32> to vector<16x128xbf16>
    %c0_21 = arith.constant 0 : index
    %c0_22 = arith.constant 0 : index
    %40 = vector.load %arg8[%c0_21, %c0_22] : memref<16x128xbf16, #tpu.memory_space<vmem>>, vector<16x128xbf16>
    tpu.vector_store %arg8[%c0_21, %c0_22], %39 {strides = array<i32>} : memref<16x128xbf16, #tpu.memory_space<vmem>>, vector<16x128xbf16>,
    return
  }
  func.func @transform_0(%arg0: i32) -> (i32, i32) {
    %c0_i32 = arith.constant 0 : i32
    %c0_i32_0 = arith.constant 0 : i32
    return %arg0, %c0_i32 : i32, i32
  }
  func.func @transform_1(%arg0: i32) -> (i32, i32) {
    %c0_i32 = arith.constant 0 : i32
    %c0_i32_0 = arith.constant 0 : i32
    %c0_i32_1 = arith.constant 0 : i32
    return %c0_i32, %c0_i32_0 : i32, i32
  }
  func.func @transform_2(%arg0: i32) -> (i32, i32) {
    %c0_i32 = arith.constant 0 : i32
    %c0_i32_0 = arith.constant 0 : i32
    %c0_i32_1 = arith.constant 0 : i32
    return %c0_i32, %c0_i32_0 : i32, i32
  }
  func.func @transform_3(%arg0: i32) -> (i32, i32) {
    %c0_i32 = arith.constant 0 : i32
    %c0_i32_0 = arith.constant 0 : i32
    %c0_i32_1 = arith.constant 0 : i32
    return %c0_i32, %c0_i32_0 : i32, i32
  }
  func.func @transform_4(%arg0: i32) -> (i32, i32) {
    %c0_i32 = arith.constant 0 : i32
    %c0_i32_0 = arith.constant 0 : i32
    %c0_i32_1 = arith.constant 0 : i32
    return %c0_i32, %c0_i32_0 : i32, i32
  }
  func.func @transform_5(%arg0: i32) -> (i32, i32) {
    %c0_i32 = arith.constant 0 : i32
    %c0_i32_0 = arith.constant 0 : i32
    %c0_i32_1 = arith.constant 0 : i32
    return %c0_i32, %c0_i32_0 : i32, i32
  }
  func.func @transform_6(%arg0: i32) -> (i32, i32) {
    %c0_i32 = arith.constant 0 : i32
    %c0_i32_0 = arith.constant 0 : i32
    %c0_i32_1 = arith.constant 0 : i32
    return %c0_i32, %c0_i32_0 : i32, i32
  }
  func.func @transform_7(%arg0: i32) -> (i32, i32) {
    %c0_i32 = arith.constant 0 : i32
    %c0_i32_0 = arith.constant 0 : i32
    return %arg0, %c0_i32 : i32, i32
  }
}

</mosaic_0001>

<llo_original>
// kernel: tpu_custom_call.1
$region0: #{tpu_custom_call.1}
  #allocation0 [shape = 'u32[]', space=smem, size = 0x4, offset = 0x4, fixed_abs, tag = 'smem constant byte address 0x4 - core index']
  #allocation1 [shape = 'u32[144,128]{1,0:T(1,128)}', space=vmem, size = 0x12000, scoped, tag = 'internal scratch']
  %s0 = inlined_call_operand.hbm [shape: f32[16,32], index: 0, kind: input, shape index: {}]
  %s1 = inlined_call_operand.hbm [shape: bf16[32,128], index: 1, kind: input, shape index: {}]
  %s2 = inlined_call_operand.vmem [shape: f32[1,128], index: 2, kind: input, shape index: {}]
  %s3 = inlined_call_operand.hbm [shape: bf16[128,256], index: 3, kind: input, shape index: {}]
  %s4 = inlined_call_operand.vmem [shape: f32[1,256], index: 4, kind: input, shape index: {}]
  %s5 = inlined_call_operand.hbm [shape: bf16[256,128], index: 5, kind: input, shape index: {}]
  %s6 = inlined_call_operand.vmem [shape: f32[1,128], index: 6, kind: input, shape index: {}]
  %s7 = inlined_call_operand.hbm [shape: bf16[16,128], index: 7, kind: output, shape index: {}]
  %s8 = sld [smem:[#allocation0]]
  $region54: #{tpu_custom_call.1} parent=0
    _
  %s10 = ssub.s32 1, %s8
  %s11 = scalar_select 0, %s10, %s8
  $region1: #{tpu_custom_call.1} parent=0
    #allocation2 [shape = 'u8[8192]{0}', space=vmem, size = 0x2000, scoped, tag = 'input window, operand 0, single buffered']
    #allocation3 [shape = 's32[1]{0}', space=sflag, size = 0x4, scoped, tag = 'scoped memory for tpu_custom_call.1']
    #allocation4 [shape = 's32[1]{0}', space=sflag, size = 0x4, scoped, tag = 'scoped memory for tpu_custom_call.1']
    #allocation5 [shape = 'u8[8192]{0}', space=vmem, size = 0x2000, scoped, tag = 'input window, operand 1, single buffered']
    #allocation6 [shape = 's32[1]{0}', space=sflag, size = 0x4, scoped, tag = 'scoped memory for tpu_custom_call.1']
    #allocation7 [shape = 'u8[65536]{0}', space=vmem, size = 0x10000, scoped, tag = 'input window, operand 3, single buffered']
    #allocation8 [shape = 'u8[65536]{0}', space=vmem, size = 0x10000, scoped, tag = 'input window, operand 5, single buffered']
    #allocation9 [shape = 's32[1]{0}', space=sflag, size = 0x4, scoped, tag = 'scoped memory for tpu_custom_call.1']
    #allocation10 [shape = 'u8[4096]{0}', space=vmem, size = 0x1000, scoped, tag = 'output window, operand 0, single buffered']
    %12 = vsyncpa [#allocation3], 0
    %13 = vsyncpa [#allocation6], 0
    %14 = vsyncpa [#allocation9], 0
    %15 = vsyncpa [#allocation4], 0
    // Predicated region
    $region2: #{tpu_custom_call.1} parent=1 // pred_check
      _
    $region3: #{tpu_custom_call.1} parent=1 // pred_check_branch
      %17 = sbr.rel (0) target = $region5
    $region4: #{tpu_custom_call.1} parent=1 // pred_region
      %s19 = ssub.s32 256, 256
      %20 = vsyncadd [#allocation3], %s19
      %s21 = sshll.u32 [#allocation2], 4
      %s22 = int_to_ptr.vmem [resolvable:$true] %s21
      %27 = dma.hbm_to_vmem [thread:$0]  %s0, 256, %s22, [#allocation3], 128, 128, 8
    $region5: #{tpu_custom_call.1} parent=1 // pred_fallthru
      _
    // Predicated region
    $region6: #{tpu_custom_call.1} parent=1 // pred_check
      _
    $region7: #{tpu_custom_call.1} parent=1 // pred_check_branch
      %29 = sbr.rel (0) target = $region9
    $region8: #{tpu_custom_call.1} parent=1 // pred_region
      %s31 = ssub.s32 256, 256
      %32 = vsyncadd [#allocation6], %s31
      %s33 = sshll.u32 [#allocation5], 4
      %s34 = int_to_ptr.vmem [resolvable:$true] %s33
      %39 = dma.hbm_to_vmem [thread:$0]  %s1, 256, %s34, [#allocation6], 64, 64, 4
    $region9: #{tpu_custom_call.1} parent=1 // pred_fallthru
      _
    // Predicated region
    $region10: #{tpu_custom_call.1} parent=1 // pred_check
      _
    $region11: #{tpu_custom_call.1} parent=1 // pred_check_branch
      %41 = sbr.rel (0) target = $region13
    $region12: #{tpu_custom_call.1} parent=1 // pred_region
      _
    $region13: #{tpu_custom_call.1} parent=1 // pred_fallthru
      _
    // Predicated region
    $region14: #{tpu_custom_call.1} parent=1 // pred_check
      _
    $region15: #{tpu_custom_call.1} parent=1 // pred_check_branch
      %43 = sbr.rel (0) target = $region17
    $region16: #{tpu_custom_call.1} parent=1 // pred_region
      %s45 = ssub.s32 2048, 2048
      %46 = vsyncadd [#allocation6], %s45
      %s47 = sshll.u32 [#allocation7], 4
      %s48 = int_to_ptr.vmem [resolvable:$true] %s47
      %53 = dma.hbm_to_vmem [thread:$0]  %s3, 2048, %s48, [#allocation6], 128, 128, 8
    $region17: #{tpu_custom_call.1} parent=1 // pred_fallthru
      _
    // Predicated region
    $region18: #{tpu_custom_call.1} parent=1 // pred_check
      _
    $region19: #{tpu_custom_call.1} parent=1 // pred_check_branch
      %55 = sbr.rel (0) target = $region21
    $region20: #{tpu_custom_call.1} parent=1 // pred_region
      _
    $region21: #{tpu_custom_call.1} parent=1 // pred_fallthru
      _
    // Predicated region
    $region22: #{tpu_custom_call.1} parent=1 // pred_check
      _
    $region23: #{tpu_custom_call.1} parent=1 // pred_check_branch
      %57 = sbr.rel (0) target = $region25
    $region24: #{tpu_custom_call.1} parent=1 // pred_region
      %s59 = ssub.s32 2048, 2048
      %60 = vsyncadd [#allocation9], %s59
      %s61 = sshll.u32 [#allocation8], 4
      %s62 = int_to_ptr.vmem [resolvable:$true] %s61
      %67 = dma.hbm_to_vmem [thread:$0]  %s5, 2048, %s62, [#allocation9], 64, 64, 4
    $region25: #{tpu_custom_call.1} parent=1 // pred_fallthru
      _
    // Predicated region
    $region26: #{tpu_custom_call.1} parent=1 // pred_check
      _
    $region27: #{tpu_custom_call.1} parent=1 // pred_check_branch
      %69 = sbr.rel (0) target = $region29
    $region28: #{tpu_custom_call.1} parent=1 // pred_region
      _
    $region29: #{tpu_custom_call.1} parent=1 // pred_fallthru
      _
    // Predicated region
    $region30: #{tpu_custom_call.1} parent=1 // pred_check
      _
    $region31: #{tpu_custom_call.1} parent=1 // pred_check_branch
      %71 = sbr.rel (0) target = $region33
    $region32: #{tpu_custom_call.1} parent=1 // pred_region
      %72 = dma.done [#allocation3], 256
    $region33: #{tpu_custom_call.1} parent=1 // pred_fallthru
      _
    // Predicated region
    $region34: #{tpu_custom_call.1} parent=1 // pred_check
      _
    $region35: #{tpu_custom_call.1} parent=1 // pred_check_branch
      %74 = sbr.rel (0) target = $region37
    $region36: #{tpu_custom_call.1} parent=1 // pred_region
      %75 = dma.done [#allocation6], 256
    $region37: #{tpu_custom_call.1} parent=1 // pred_fallthru
      _
    // Predicated region
    $region38: #{tpu_custom_call.1} parent=1 // pred_check
      _
    $region39: #{tpu_custom_call.1} parent=1 // pred_check_branch
      %77 = sbr.rel (0) target = $region41
    $region40: #{tpu_custom_call.1} parent=1 // pred_region
      %78 = dma.done [#allocation6], 2048
    $region41: #{tpu_custom_call.1} parent=1 // pred_fallthru
      _
    // Predicated region
    $region42: #{tpu_custom_call.1} parent=1 // pred_check
      _
    $region43: #{tpu_custom_call.1} parent=1 // pred_check_branch
      %80 = sbr.rel (0) target = $region45
    $region44: #{tpu_custom_call.1} parent=1 // pred_region
      %81 = dma.done [#allocation9], 2048
    $region45: #{tpu_custom_call.1} parent=1 // pred_fallthru
      _
    %v83 = vld [vmem:[#allocation2] sm:$0xff]
    %v84 = vld [vmem:[#allocation2 + $0x8] sm:$0xff]
    %v85 = vpack.c.bf16 %v84, %v83
    %v86 = vld [vmem:[#allocation5] sm:$0xf]
    %v87 = vld [vmem:[#allocation5 + $0x4] sm:$0xf]
    %v88 = vld [vmem:[#allocation5 + $0x8] sm:$0xf]
    %v89 = vld [vmem:[#allocation5 + $0xc] sm:$0xf]
    %v90 = vld [vmem:[%s2] sm:$0x1]
    %v92 = vlaneseq
    %v93 = vshrl.u32 %v92, 7
    %v94 = vsub.s32 0, %v93
    %v95 = vrot.slane %v90, %v94
    %v101 = vunpack.c.l.b16 %v86
    %v102 = vunpack.c.l.b16 %v87
    %v103 = vunpack.c.l.b16 %v88
    %v104 = vunpack.c.l.b16 %v89
    %v105 = vpack.c.b16 %v102, %v101
    %v106 = vpack.c.b16 %v104, %v103
    %vm109 = vcmask 261120
    %v111 = vsel %vm109, %v85, 0
    %113 = vmatprep.subr.bf16.mxu0 0
    %114 = vmatpush1.bf16.msra.mxu0 %v105
    %115 = vmatprep.subr.bf16.mxu0 0
    %116 = vmatpush1.bf16.msra.mxu0 %v106
    %117 = vmatprep.subr.bf16.mxu0 0
    %118 = vmatpush1.bf16.msra.mxu0 0
    %119 = vmatprep.subr.bf16.mxu0 0
    %120 = vmatpush1.bf16.msra.mxu0 0
    %121 = vmatprep.subr.bf16.mxu0 0
    %122 = vmatpush1.bf16.msra.mxu0 0
    %123 = vmatprep.subr.bf16.mxu0 0
    %124 = vmatpush1.bf16.msra.mxu0 0
    %125 = vmatprep.subr.bf16.mxu0 0
    %126 = vmatpush1.bf16.msra.mxu0 0
    %127 = vmatprep.subr.bf16.mxu0 0
    %128 = vmatpush1.bf16.msra.mxu0 0
    %129 = vmatprep.subr.bf16.mxu0 0
    %130 = vmatpush1.bf16.msra.mxu0 0
    %131 = vmatprep.subr.bf16.mxu0 0
    %132 = vmatpush1.bf16.msra.mxu0 0
    %133 = vmatprep.subr.bf16.mxu0 0
    %134 = vmatpush1.bf16.msra.mxu0 0
    %135 = vmatprep.subr.bf16.mxu0 0
    %136 = vmatpush1.bf16.msra.mxu0 0
    %137 = vmatprep.subr.bf16.mxu0 0
    %138 = vmatpush1.bf16.msra.mxu0 0
    %139 = vmatprep.subr.bf16.mxu0 0
    %140 = vmatpush1.bf16.msra.mxu0 0
    %141 = vmatprep.subr.bf16.mxu0 0
    %142 = vmatpush1.bf16.msra.mxu0 0
    %143 = vmatprep.subr.bf16.mxu0 0
    %144 = vmatpush1.bf16.msra.mxu0 0
    %145 = vmatprep.mubr.bf16.mxu0 0
    %146 = vmatmul.mubr.bf16.gmra.mrb[0].mxu0 %v111
    %v147 = vpop.f32.mrb[0].mxu0
    %v148 = vadd.f32 %v95, %v147
    %v149 = vpop.f32.mrb[0].mxu0
    %v150 = vpop.f32.mrb[0].mxu0
    %v151 = vadd.f32 %v95, %v150
    %v152 = vpop.f32.mrb[0].mxu0
    %153 = vdwg.mxu0
    %v154 = vmax.f32 %v148, 0.0
    %v155 = vmax.f32 %v151, 0.0
    %v156 = vpack.c.bf16 %v155, %v154
    %v157 = vld [vmem:[#allocation7] sm:$0xff]
    %v158 = vld [vmem:[#allocation7 + $0x8] sm:$0xff]
    %v159 = vld [vmem:[#allocation7 + $0x10] sm:$0xff]
    %v160 = vld [vmem:[#allocation7 + $0x18] sm:$0xff]
    %v161 = vld [vmem:[#allocation7 + $0x20] sm:$0xff]
    %v162 = vld [vmem:[#allocation7 + $0x28] sm:$0xff]
    %v163 = vld [vmem:[#allocation7 + $0x30] sm:$0xff]
    %v164 = vld [vmem:[#allocation7 + $0x38] sm:$0xff]
    %v165 = vld [vmem:[#allocation7 + $0x40] sm:$0xff]
    %v166 = vld [vmem:[#allocation7 + $0x48] sm:$0xff]
    %v167 = vld [vmem:[#allocation7 + $0x50] sm:$0xff]
    %v168 = vld [vmem:[#allocation7 + $0x58] sm:$0xff]
    %v169 = vld [vmem:[#allocation7 + $0x60] sm:$0xff]
    %v170 = vld [vmem:[#allocation7 + $0x68] sm:$0xff]
    %v171 = vld [vmem:[#allocation7 + $0x70] sm:$0xff]
    %v172 = vld [vmem:[#allocation7 + $0x78] sm:$0xff]
    %v173 = vld [vmem:[%s4] sm:$0x3]
    %v175 = vlaneseq
    %v176 = vshrl.u32 %v175, 7
    %v177 = vsub.s32 0, %v176
    %v178 = vrot.slane %v173, %v177
    %v179 = vlaneseq
    %v180 = vshrl.u32 %v179, 7
    %v181 = vsub.s32 1, %v180
    %v182 = vrot.slane %v173, %v181
    %v201 = vunpack.c.l.b16 %v157
    %v202 = vunpack.c.h.b16 %v157
    %v203 = vunpack.c.l.b16 %v158
    %v204 = vunpack.c.h.b16 %v158
    %v205 = vunpack.c.l.b16 %v159
    %v206 = vunpack.c.h.b16 %v159
    %v207 = vunpack.c.l.b16 %v160
    %v208 = vunpack.c.h.b16 %v160
    %v209 = vunpack.c.l.b16 %v161
    %v210 = vunpack.c.h.b16 %v161
    %v211 = vunpack.c.l.b16 %v162
    %v212 = vunpack.c.h.b16 %v162
    %v213 = vunpack.c.l.b16 %v163
    %v214 = vunpack.c.h.b16 %v163
    %v215 = vunpack.c.l.b16 %v164
    %v216 = vunpack.c.h.b16 %v164
    %v217 = vunpack.c.l.b16 %v165
    %v218 = vunpack.c.h.b16 %v165
    %v219 = vunpack.c.l.b16 %v166
    %v220 = vunpack.c.h.b16 %v166
    %v221 = vunpack.c.l.b16 %v167
    %v222 = vunpack.c.h.b16 %v167
    %v223 = vunpack.c.l.b16 %v168
    %v224 = vunpack.c.h.b16 %v168
    %v225 = vunpack.c.l.b16 %v169
    %v226 = vunpack.c.h.b16 %v169
    %v227 = vunpack.c.l.b16 %v170
    %v228 = vunpack.c.h.b16 %v170
    %v229 = vunpack.c.l.b16 %v171
    %v230 = vunpack.c.h.b16 %v171
    %v231 = vunpack.c.l.b16 %v172
    %v232 = vunpack.c.h.b16 %v172
    %v233 = vpack.c.b16 %v203, %v201
    %v234 = vpack.c.b16 %v204, %v202
    %v235 = vpack.c.b16 %v207, %v205
    %v236 = vpack.c.b16 %v208, %v206
    %v237 = vpack.c.b16 %v211, %v209
    %v238 = vpack.c.b16 %v212, %v210
    %v239 = vpack.c.b16 %v215, %v213
    %v240 = vpack.c.b16 %v216, %v214
    %v241 = vpack.c.b16 %v219, %v217
    %v242 = vpack.c.b16 %v220, %v218
    %v243 = vpack.c.b16 %v223, %v221
    %v244 = vpack.c.b16 %v224, %v222
    %v245 = vpack.c.b16 %v227, %v225
    %v246 = vpack.c.b16 %v228, %v226
    %v247 = vpack.c.b16 %v231, %v229
    %v248 = vpack.c.b16 %v232, %v230
    %265 = vmatprep.subr.bf16.mxu0 %v234
    %266 = vmatpush1.bf16.msra.mxu0 %v233
    %267 = vmatprep.subr.bf16.mxu0 %v236
    %268 = vmatpush1.bf16.msra.mxu0 %v235
    %269 = vmatprep.subr.bf16.mxu0 %v238
    %270 = vmatpush1.bf16.msra.mxu0 %v237
    %271 = vmatprep.subr.bf16.mxu0 %v240
    %272 = vmatpush1.bf16.msra.mxu0 %v239
    %273 = vmatprep.subr.bf16.mxu0 %v242
    %274 = vmatpush1.bf16.msra.mxu0 %v241
    %275 = vmatprep.subr.bf16.mxu0 %v244
    %276 = vmatpush1.bf16.msra.mxu0 %v243
    %277 = vmatprep.subr.bf16.mxu0 %v246
    %278 = vmatpush1.bf16.msra.mxu0 %v245
    %279 = vmatprep.subr.bf16.mxu0 %v248
    %280 = vmatpush1.bf16.msra.mxu0 %v247
    %281 = vmatprep.subr.bf16.mxu0 0
    %282 = vmatpush1.bf16.msra.mxu0 0
    %283 = vmatprep.subr.bf16.mxu0 0
    %284 = vmatpush1.bf16.msra.mxu0 0
    %285 = vmatprep.subr.bf16.mxu0 0
    %286 = vmatpush1.bf16.msra.mxu0 0
    %287 = vmatprep.subr.bf16.mxu0 0
    %288 = vmatpush1.bf16.msra.mxu0 0
    %289 = vmatprep.subr.bf16.mxu0 0
    %290 = vmatpush1.bf16.msra.mxu0 0
    %291 = vmatprep.subr.bf16.mxu0 0
    %292 = vmatpush1.bf16.msra.mxu0 0
    %293 = vmatprep.subr.bf16.mxu0 0
    %294 = vmatpush1.bf16.msra.mxu0 0
    %295 = vmatprep.subr.bf16.mxu0 0
    %296 = vmatpush1.bf16.msra.mxu0 0
    %297 = vmatprep.mubr.bf16.mxu0 0
    %298 = vmatmul.mubr.bf16.gmra.mrb[0].mxu0 %v156
    %v299 = vpop.f32.mrb[0].mxu0
    %v300 = vadd.f32 %v178, %v299
    %v301 = vpop.f32.mrb[0].mxu0
    %v302 = vadd.f32 %v182, %v301
    %v303 = vpop.f32.mrb[0].mxu0
    %v304 = vadd.f32 %v178, %v303
    %v305 = vpop.f32.mrb[0].mxu0
    %v306 = vadd.f32 %v182, %v305
    %307 = vdwg.mxu0
    %v308 = vmax.f32 %v300, 0.0
    %v309 = vmax.f32 %v302, 0.0
    %v310 = vmax.f32 %v304, 0.0
    %v311 = vmax.f32 %v306, 0.0
    %v312 = vpack.c.bf16 %v310, %v308
    %v313 = vpack.c.bf16 %v311, %v309
    %v314 = vld [vmem:[#allocation8] sm:$0xf]
    %v315 = vld [vmem:[#allocation8 + $0x4] sm:$0xf]
    %v316 = vld [vmem:[#allocation8 + $0x8] sm:$0xf]
    %v317 = vld [vmem:[#allocation8 + $0xc] sm:$0xf]
    %v318 = vld [vmem:[#allocation8 + $0x10] sm:$0xf]
    %v319 = vld [vmem:[#allocation8 + $0x14] sm:$0xf]
    %v320 = vld [vmem:[#allocation8 + $0x18] sm:$0xf]
    %v321 = vld [vmem:[#allocation8 + $0x1c] sm:$0xf]
    %v322 = vld [vmem:[#allocation8 + $0x20] sm:$0xf]
    %v323 = vld [vmem:[#allocation8 + $0x24] sm:$0xf]
    %v324 = vld [vmem:[#allocation8 + $0x28] sm:$0xf]
    %v325 = vld [vmem:[#allocation8 + $0x2c] sm:$0xf]
    %v326 = vld [vmem:[#allocation8 + $0x30] sm:$0xf]
    %v327 = vld [vmem:[#allocation8 + $0x34] sm:$0xf]
    %v328 = vld [vmem:[#allocation8 + $0x38] sm:$0xf]
    %v329 = vld [vmem:[#allocation8 + $0x3c] sm:$0xf]
    %v330 = vld [vmem:[#allocation8 + $0x40] sm:$0xf]
    %v331 = vld [vmem:[#allocation8 + $0x44] sm:$0xf]
    %v332 = vld [vmem:[#allocation8 + $0x48] sm:$0xf]
    %v333 = vld [vmem:[#allocation8 + $0x4c] sm:$0xf]
    %v334 = vld [vmem:[#allocation8 + $0x50] sm:$0xf]
    %v335 = vld [vmem:[#allocation8 + $0x54] sm:$0xf]
    %v336 = vld [vmem:[#allocation8 + $0x58] sm:$0xf]
    %v337 = vld [vmem:[#allocation8 + $0x5c] sm:$0xf]
    %v338 = vld [vmem:[#allocation8 + $0x60] sm:$0xf]
    %v339 = vld [vmem:[#allocation8 + $0x64] sm:$0xf]
    %v340 = vld [vmem:[#allocation8 + $0x68] sm:$0xf]
    %v341 = vld [vmem:[#allocation8 + $0x6c] sm:$0xf]
    %v342 = vld [vmem:[#allocation8 + $0x70] sm:$0xf]
    %v343 = vld [vmem:[#allocation8 + $0x74] sm:$0xf]
    %v344 = vld [vmem:[#allocation8 + $0x78] sm:$0xf]
    %v345 = vld [vmem:[#allocation8 + $0x7c] sm:$0xf]
    %v346 = vld [vmem:[%s6] sm:$0x1]
    %v348 = vlaneseq
    %v349 = vshrl.u32 %v348, 7
    %v350 = vsub.s32 0, %v349
    %v351 = vrot.slane %v346, %v350
    %v385 = vunpack.c.l.b16 %v314
    %v386 = vunpack.c.l.b16 %v315
    %v387 = vunpack.c.l.b16 %v316
    %v388 = vunpack.c.l.b16 %v317
    %v389 = vunpack.c.l.b16 %v318
    %v390 = vunpack.c.l.b16 %v319
    %v391 = vunpack.c.l.b16 %v320
    %v392 = vunpack.c.l.b16 %v321
    %v393 = vunpack.c.l.b16 %v322
    %v394 = vunpack.c.l.b16 %v323
    %v395 = vunpack.c.l.b16 %v324
    %v396 = vunpack.c.l.b16 %v325
    %v397 = vunpack.c.l.b16 %v326
    %v398 = vunpack.c.l.b16 %v327
    %v399 = vunpack.c.l.b16 %v328
    %v400 = vunpack.c.l.b16 %v329
    %v401 = vunpack.c.l.b16 %v330
    %v402 = vunpack.c.l.b16 %v331
    %v403 = vunpack.c.l.b16 %v332
    %v404 = vunpack.c.l.b16 %v333
    %v405 = vunpack.c.l.b16 %v334
    %v406 = vunpack.c.l.b16 %v335
    %v407 = vunpack.c.l.b16 %v336
    %v408 = vunpack.c.l.b16 %v337
    %v409 = vunpack.c.l.b16 %v338
    %v410 = vunpack.c.l.b16 %v339
    %v411 = vunpack.c.l.b16 %v340
    %v412 = vunpack.c.l.b16 %v341
    %v413 = vunpack.c.l.b16 %v342
    %v414 = vunpack.c.l.b16 %v343
    %v415 = vunpack.c.l.b16 %v344
    %v416 = vunpack.c.l.b16 %v345
    %v417 = vpack.c.b16 %v386, %v385
    %v418 = vpack.c.b16 %v388, %v387
    %v419 = vpack.c.b16 %v390, %v389
    %v420 = vpack.c.b16 %v392, %v391
    %v421 = vpack.c.b16 %v394, %v393
    %v422 = vpack.c.b16 %v396, %v395
    %v423 = vpack.c.b16 %v398, %v397
    %v424 = vpack.c.b16 %v400, %v399
    %v425 = vpack.c.b16 %v402, %v401
    %v426 = vpack.c.b16 %v404, %v403
    %v427 = vpack.c.b16 %v406, %v405
    %v428 = vpack.c.b16 %v408, %v407
    %v429 = vpack.c.b16 %v410, %v409
    %v430 = vpack.c.b16 %v412, %v411
    %v431 = vpack.c.b16 %v414, %v413
    %v432 = vpack.c.b16 %v416, %v415
    %449 = vmatprep.subr.bf16.mxu0 0
    %450 = vmatpush1.bf16.msra.mxu0 %v417
    %451 = vmatprep.subr.bf16.mxu0 0
    %452 = vmatpush1.bf16.msra.mxu0 %v418
    %453 = vmatprep.subr.bf16.mxu0 0
    %454 = vmatpush1.bf16.msra.mxu0 %v419
    %455 = vmatprep.subr.bf16.mxu0 0
    %456 = vmatpush1.bf16.msra.mxu0 %v420
    %457 = vmatprep.subr.bf16.mxu0 0
    %458 = vmatpush1.bf16.msra.mxu0 %v421
    %459 = vmatprep.subr.bf16.mxu0 0
    %460 = vmatpush1.bf16.msra.mxu0 %v422
    %461 = vmatprep.subr.bf16.mxu0 0
    %462 = vmatpush1.bf16.msra.mxu0 %v423
    %463 = vmatprep.subr.bf16.mxu0 0
    %464 = vmatpush1.bf16.msra.mxu0 %v424
    %465 = vmatprep.subr.bf16.mxu0 0
    %466 = vmatpush1.bf16.msra.mxu0 %v425
    %467 = vmatprep.subr.bf16.mxu0 0
    %468 = vmatpush1.bf16.msra.mxu0 %v426
    %469 = vmatprep.subr.bf16.mxu0 0
    %470 = vmatpush1.bf16.msra.mxu0 %v427
    %471 = vmatprep.subr.bf16.mxu0 0
    %472 = vmatpush1.bf16.msra.mxu0 %v428
    %473 = vmatprep.subr.bf16.mxu0 0
    %474 = vmatpush1.bf16.msra.mxu0 %v429
    %475 = vmatprep.subr.bf16.mxu0 0
    %476 = vmatpush1.bf16.msra.mxu0 %v430
    %477 = vmatprep.subr.bf16.mxu0 0
    %478 = vmatpush1.bf16.msra.mxu0 %v431
    %479 = vmatprep.subr.bf16.mxu0 0
    %480 = vmatpush1.bf16.msra.mxu0 %v432
    %481 = vmatprep.mubr.bf16.mxu0 %v313
    %482 = vmatmul.mubr.bf16.gmra.mrb[0].mxu0 %v312
    %v483 = vpop.f32.mrb[0].mxu0
    %v484 = vadd.f32 %v351, %v483
    %v485 = vpop.f32.mrb[0].mxu0
    %v486 = vpop.f32.mrb[0].mxu0
    %v487 = vadd.f32 %v351, %v486
    %v488 = vpop.f32.mrb[0].mxu0
    %489 = vdwg.mxu0
    %v490 = vlaneseq
    %v491 = vand.u32 %v490, 127
    %vm492 = vcmp.eq.s32.totalorder %v491, 8
    %v493 = vsel %vm492, %v484, 0.0
    %v494 = vsel %vm492, %v487, 0.0
    %495 = vadd.xlane.f32.xlu0 %v493
    %v496 = vpop.xlane.xlu0 %495
    %497 = vadd.xlane.f32.xlu0 %v494
    %v498 = vpop.xlane.xlu0 %497
    %499 = vadd.xlane.f32.xlu0 %v484
    %v500 = vpop.xlane.xlu0 %499
    %501 = vadd.xlane.f32.xlu0 %v487
    %v502 = vpop.xlane.xlu0 %501
    %v503 = vsub.f32 %v500, %v496
    %v504 = vsub.f32 %v502, %v498
    %v505 = vmul.f32 %v503, 0.125
    %v506 = vmul.f32 %v504, 0.125
    %v507 = vadd.f32 %v484, %v496
    %v508 = vadd.f32 %v487, %v498
    %v509 = vsub.f32 %v507, %v505
    %v510 = vsub.f32 %v508, %v506
    %v511 = vpack.c.bf16 %v510, %v509
    %v513 = vunpack.c.l.b16 %v511
    %v514 = vunpack.c.h.b16 %v511
    %v515 = vpack.c.b16 %v513, %v513
    %v516 = vpack.c.b16 %v514, %v514
    %519 = vst [vmem:[#allocation10] sm:$0xf] %v515
    %520 = vst [vmem:[#allocation10 + $0x4] sm:$0xf] %v516
    // Predicated region
    $region46: #{tpu_custom_call.1} parent=1 // pred_check
      _
    $region47: #{tpu_custom_call.1} parent=1 // pred_check_branch
      %522 = sbr.rel (0) target = $region49
    $region48: #{tpu_custom_call.1} parent=1 // pred_region
      %s524 = ssub.s32 128, 128
      %525 = vsyncadd [#allocation4], %s524
      %s526 = sshll.u32 [#allocation10], 4
      %s527 = int_to_ptr.vmem [resolvable:$true] %s526
      %532 = dma.vmem_to_hbm [thread:$0]  %s527, 128, %s7, [#allocation4], 64, 64, 4
    $region49: #{tpu_custom_call.1} parent=1 // pred_fallthru
      _
    // Predicated region
    $region50: #{tpu_custom_call.1} parent=1 // pred_check
      _
    $region51: #{tpu_custom_call.1} parent=1 // pred_check_branch
      %534 = sbr.rel (0) target = $region53
    $region52: #{tpu_custom_call.1} parent=1 // pred_region
      %535 = dma.done [#allocation4], 128
    $region53: #{tpu_custom_call.1} parent=1 // pred_fallthru
      _
    %536 = vsyncpa [#allocation3], 1
    %537 = vsyncpa [#allocation6], 1
    %538 = vsyncpa [#allocation9], 1
    %539 = vsyncpa [#allocation4], 1

</llo_original>
